<compile_context>
chip_gen: v7x
topology: tpu7x:2x2x1
jax: 0.10.0
libtpu: 0.0.40
codegen_flags: <defaults>
</compile_context>

<pallas_src>
import functools

import jax
import jax.numpy as jnp
from jax.experimental import pallas as pl
from jax.experimental.pallas import tpu as pltpu

NUM_CLASSES = 2
HIDDEN = 16
IN_FEATS = 1
D_PAD = 128  # lane-dense padding for the hidden / class feature dims


def _round_up(v, m):
    return (v + m - 1) // m * m


def _vmem_budget():
    """Per-chip VMEM budget: ~96 MiB on v5e/v6e (128 MiB), ~48 MiB on v7x (64 MiB)."""
    try:
        phys = int(pltpu.get_tpu_info().vmem_capacity_bytes)
    except Exception:
        phys = 64 << 20  # conservative fallback = v7x per-core VMEM
    return max(32 << 20, phys - phys // 4)


def _masked_log_softmax(z, num_classes):
    """log_softmax over the real class columns; keeps the full 128-lane vreg so the
    output store stays lane-dense.  -1e30 (NOT -inf): exp underflows to 0 and avoids
    inf-inf NaNs."""
    col = jax.lax.broadcasted_iota(jnp.int32, z.shape, 1)
    z = jnp.where(col < num_classes, z, -1e30)
    zmax = jnp.max(z, axis=1, keepdims=True)
    zs = z - zmax
    lse = jnp.log(jnp.sum(jnp.exp(zs), axis=1, keepdims=True))
    return zs - lse


# ---------------------------------------------------------------------------
# Fused path: whole bf16 A resident in VMEM, A read from HBM exactly once.
# ---------------------------------------------------------------------------
def gcn_fused_kernel(a_ref, xw1_ref, b1_ref, w2_ref, b2_ref, o_ref, h_ref, *, num_classes):
    a = a_ref[...]                                                        # bf16 [N,N]
    # layer 1: H = relu(A @ XW1 + b1), kept in a bf16 VMEM scratch (never hits HBM)
    h = jnp.dot(a, xw1_ref[...], preferred_element_type=jnp.float32) + b1_ref[...]
    h_ref[...] = jnp.maximum(h, 0.0).astype(jnp.bfloat16)
    # dropout is identity (module evaluated with training=False)
    # layer 2: O = log_softmax((A @ H) @ W2 + b2); A@H stays f32 into the tiny W2 matmul
    ah = jnp.dot(a, h_ref[...], preferred_element_type=jnp.float32)      # [N,128] f32
    z = jnp.dot(ah, w2_ref[...], preferred_element_type=jnp.float32) + b2_ref[...]
    o_ref[...] = _masked_log_softmax(z, num_classes)


def _fused_fits(n_pad, budget):
    need = (n_pad * n_pad * 2            # bf16 A (single copy, unblocked VMEM operand)
            + n_pad * D_PAD * 2          # bf16 XW1
            + n_pad * D_PAD * 2          # bf16 H scratch
            + n_pad * D_PAD * 4          # f32 output
            + 4 * n_pad * D_PAD * 4      # f32 intermediates (H pre-relu, A@H, z, softmax)
            + D_PAD * D_PAD * 4
            + (4 << 20))                 # slack (weights / bias / misc)
    return need <= budget


# ---------------------------------------------------------------------------
# Streamed fallback path: row-blocked + K-blocked, two passes (H materialized in HBM).
# ---------------------------------------------------------------------------
def layer1_tiled_kernel(a_ref, xw1_ref, b1_ref, h_ref, acc_ref):
    """H[i] = relu(sum_k A[i,k] @ XW1[k] + b1), accumulated in f32, stored bf16."""
    k = pl.program_id(1)

    @pl.when(k == 0)
    def _():
        acc_ref[...] = jnp.zeros_like(acc_ref)

    acc_ref[...] += jnp.dot(a_ref[...], xw1_ref[...], preferred_element_type=jnp.float32)

    @pl.when(k == pl.num_programs(1) - 1)
    def _():
        h_ref[...] = jnp.maximum(acc_ref[...] + b1_ref[...], 0.0).astype(jnp.bfloat16)


def layer2_tiled_kernel(a_ref, h_ref, w2_ref, b2_ref, o_ref, acc_ref, *, num_classes):
    """O[i] = log_softmax((sum_k A[i,k] @ H[k]) @ W2 + b2)."""
    k = pl.program_id(1)

    @pl.when(k == 0)
    def _():
        acc_ref[...] = jnp.zeros_like(acc_ref)

    acc_ref[...] += jnp.dot(a_ref[...], h_ref[...], preferred_element_type=jnp.float32)

    @pl.when(k == pl.num_programs(1) - 1)
    def _():
        z = jnp.dot(acc_ref[...], w2_ref[...], preferred_element_type=jnp.float32) + b2_ref[...]
        o_ref[...] = _masked_log_softmax(z, num_classes)


def _choose_tiles(n128):
    """Row (tm) / contraction (tk) tiles for the streamed path.

    512 sits on the measured HBM-roofline plateau and bounds zero-padding overhead
    (n_pad rounds to a tk multiple).  Use 1024 rows only when it divides n_pad evenly
    AND still leaves >=4 row steps (v7x has 2 TensorCores to keep busy).  Per-step
    working set is <= ~6 MiB (A tile + RHS tile double-buffered + f32 accumulator +
    output tile), far under any chip's VMEM budget regardless of N.
    """
    tk = min(512, n128)
    n_pad = _round_up(n128, tk)
    tm = 1024 if (n_pad % 1024 == 0 and n_pad // 1024 >= 4) else tk
    return tm, tk, n_pad


# ---------------------------------------------------------------------------
# Wrapper
# ---------------------------------------------------------------------------
def _pad_operands(a_hat, x, w1, b1, w2, b2, n, n_pad):
    """Zero-padding of rows/cols is mathematically inert for the real rows
    (A's padded columns are zero, so padded H rows never reach real outputs)."""
    a_p = jnp.zeros((n_pad, n_pad), jnp.bfloat16).at[:n, :n].set(a_hat.astype(jnp.bfloat16))
    # Layer 1 is rank-1 (IN_FEATS == 1): XW1 = x * w1 is an [n,16] broadcast product,
    # computed once here (grid-invariant) instead of every grid step inside the kernel.
    xw1 = (x * w1).astype(jnp.bfloat16)                                    # [n, HIDDEN]
    xw1_p = jnp.zeros((n_pad, D_PAD), jnp.bfloat16).at[:n, :HIDDEN].set(xw1)
    b1_p = jnp.zeros((1, D_PAD), jnp.float32).at[:, :HIDDEN].set(b1[None, :])
    w2_p = jnp.zeros((D_PAD, D_PAD), jnp.float32).at[:HIDDEN, :NUM_CLASSES].set(w2)
    b2_p = jnp.zeros((1, D_PAD), jnp.float32).at[:, :NUM_CLASSES].set(b2[None, :])
    return a_p, xw1_p, b1_p, w2_p, b2_p


def _gcn_fused(a_hat, x, w1, b1, w2, b2, n, n_pad, budget):
    a_p, xw1_p, b1_p, w2_p, b2_p = _pad_operands(a_hat, x, w1, b1, w2, b2, n, n_pad)
    vmem = pl.BlockSpec(memory_space=pltpu.MemorySpace.VMEM)   # whole array, single copy
    out = pl.pallas_call(
        functools.partial(gcn_fused_kernel, num_classes=NUM_CLASSES),
        out_shape=jax.ShapeDtypeStruct((n_pad, D_PAD), jnp.float32),
        in_specs=[vmem, vmem, vmem, vmem, vmem],
        out_specs=vmem,
        scratch_shapes=[pltpu.VMEM((n_pad, D_PAD), jnp.bfloat16)],        # H scratch
        compiler_params=pltpu.CompilerParams(vmem_limit_bytes=int(budget)),
    )(a_p, xw1_p, b1_p, w2_p, b2_p)
    return out[:n, :NUM_CLASSES]


def _gcn_tiled(a_hat, x, w1, b1, w2, b2, n, n128, budget):
    tm, tk, n_pad = _choose_tiles(n128)
    a_p, xw1_p, b1_p, w2_p, b2_p = _pad_operands(a_hat, x, w1, b1, w2, b2, n, n_pad)

    grid = (n_pad // tm, n_pad // tk)
    a_spec = pl.BlockSpec((tm, tk), lambda i, k: (i, k))
    rhs_spec = pl.BlockSpec((tk, D_PAD), lambda i, k: (k, 0))     # XW1 / H contraction block
    row_spec = pl.BlockSpec((1, D_PAD), lambda i, k: (0, 0))      # biases (tiny residents)
    w2_spec = pl.BlockSpec((D_PAD, D_PAD), lambda i, k: (0, 0))
    out_spec = pl.BlockSpec((tm, D_PAD), lambda i, k: (i, 0))     # resident across K axis
    acc = pltpu.VMEM((tm, D_PAD), jnp.float32)
    cparams = pltpu.CompilerParams(
        dimension_semantics=("parallel", "arbitrary"),
        vmem_limit_bytes=int(budget),
    )

    # pass 1: H = relu(A @ XW1 + b1), materialized once in bf16
    h = pl.pallas_call(
        layer1_tiled_kernel,
        out_shape=jax.ShapeDtypeStruct((n_pad, D_PAD), jnp.bfloat16),
        grid=grid,
        in_specs=[a_spec, rhs_spec, row_spec],
        out_specs=out_spec,
        scratch_shapes=[acc],
        compiler_params=cparams,
    )(a_p, xw1_p, b1_p)

    # pass 2: O = log_softmax((A @ H) @ W2 + b2)
    out = pl.pallas_call(
        functools.partial(layer2_tiled_kernel, num_classes=NUM_CLASSES),
        out_shape=jax.ShapeDtypeStruct((n_pad, D_PAD), jnp.float32),
        grid=grid,
        in_specs=[a_spec, rhs_spec, w2_spec, row_spec],
        out_specs=out_spec,
        scratch_shapes=[acc],
        compiler_params=cparams,
    )(a_p, h, w2_p, b2_p)

    return out[:n, :NUM_CLASSES]


def gcn_forward(a_hat, x, w1, b1, w2, b2, *, force_tiled=False):
    """a_hat: [N,N] f32 normalized adjacency, x: [N,1] f32; weights in natural shapes.
    Returns [N, 2] log-probabilities."""
    n = a_hat.shape[0]
    budget = _vmem_budget()
    n128 = _round_up(n, 128)          # lane-aligned contraction dim
    if not force_tiled and _fused_fits(n128, budget):
        return _gcn_fused(a_hat, x, w1, b1, w2, b2, n, n128, budget)
    return _gcn_tiled(a_hat, x, w1, b1, w2, b2, n, n128, budget)


# TODO(synk): for genuinely large sparse graphs, replace the dense O(N^2) adjacency with a
# scalar-prefetched block-sparse formulation (PrefetchScalarGridSpec over nonzero A blocks).


def build_normalized_adjacency(edge_index, num_nodes):
    """PyG GCNConv default: A_hat = D^{-1/2} (A + I) D^{-1/2},
       messages flow source->target, degrees computed on targets (incl. self-loops)."""
    src, dst = edge_index[0], edge_index[1]
    adj = jnp.zeros((num_nodes, num_nodes), jnp.float32).at[dst, src].add(1.0)
    adj = adj + jnp.eye(num_nodes, dtype=jnp.float32)
    deg = adj.sum(axis=1)
    dinv = jnp.where(deg > 0, 1.0 / jnp.sqrt(deg), 0.0)
    return dinv[:, None] * adj * dinv[None, :]


def reference_forward(a_hat, x, w1, b1, w2, b2):
    """Pure-JAX f32 reference for correctness checking."""
    h = jnp.maximum(a_hat @ (x @ w1) + b1[None, :], 0.0)
    z = a_hat @ (h @ w2) + b2[None, :]
    return jax.nn.log_softmax(z, axis=1)


def _make_graph(key, n, n_extra):
    k_x, k_e = jax.random.split(key)
    x = jax.random.bernoulli(k_x, 0.5, (n, IN_FEATS)).astype(jnp.float32)
    ring_src = jnp.arange(n, dtype=jnp.int32)
    ring_dst = (ring_src + 1) % n
    extra_src = jax.random.randint(k_e, (n_extra,), 0, n, dtype=jnp.int32)
    extra_dst = (extra_src + 3) % n
    edge_index = jnp.stack(
        [jnp.concatenate([ring_src, extra_src]), jnp.concatenate([ring_dst, extra_dst])]
    )
    return x, edge_index


if __name__ == "__main__":
    N = 16  # number of DHG nodes (small synthetic graph)

    key = jax.random.PRNGKey(0)
    k_g, k_w1, k_w2 = jax.random.split(key, 3)

    # node features: 1.0 if node type == 'message' else 0.0  -> [N, 1]
    x, edge_index = _make_graph(k_g, N, 8)
    a_hat = build_normalized_adjacency(edge_index, N)

    # deterministic Glorot-ish parameter init (GCNConv(1,16) and GCNConv(16,2))
    w1 = jax.random.normal(k_w1, (IN_FEATS, HIDDEN), jnp.float32) * (
        1.0 / jnp.sqrt(IN_FEATS + HIDDEN)
    )
    b1 = jnp.zeros((HIDDEN,), jnp.float32)
    w2 = jax.random.normal(k_w2, (HIDDEN, NUM_CLASSES), jnp.float32) * (
        1.0 / jnp.sqrt(HIDDEN + NUM_CLASSES)
    )
    b2 = jnp.zeros((NUM_CLASSES,), jnp.float32)

    ref = reference_forward(a_hat, x, w1, b1, w2, b2)

    # 1) fused single-pass path (A read from HBM once, H never leaves VMEM)
    out = jax.block_until_ready(gcn_forward(a_hat, x, w1, b1, w2, b2))
    assert out.shape == (N, NUM_CLASSES)
    assert bool(jnp.allclose(jnp.exp(out).sum(axis=1), 1.0, atol=1e-4))
    assert bool(jnp.allclose(out, ref, atol=5e-2))

    # 2) streamed fallback path, same tiny graph (single row/K block)
    out_t = jax.block_until_ready(gcn_forward(a_hat, x, w1, b1, w2, b2, force_tiled=True))
    assert bool(jnp.allclose(out_t, ref, atol=5e-2))

    # 3) streamed fallback path with multiple row blocks and multiple K blocks
    N2 = 600
    x2, edge_index2 = _make_graph(jax.random.PRNGKey(1), N2, 64)
    a_hat2 = build_normalized_adjacency(edge_index2, N2)
    ref2 = reference_forward(a_hat2, x2, w1, b1, w2, b2)
    out2 = jax.block_until_ready(gcn_forward(a_hat2, x2, w1, b1, w2, b2, force_tiled=True))
    assert out2.shape == (N2, NUM_CLASSES)
    assert bool(jnp.allclose(out2, ref2, atol=5e-2))

    print("KERNEL_OK")
</pallas_src>

<mosaic_0001>
module attributes {stable_mosaic.version = 11 : i64} {
  func.func @gcn_fused_kernel(%arg0: memref<128x128xbf16, #tpu.memory_space<vmem>>, %arg1: memref<128x128xbf16, #tpu.memory_space<vmem>>, %arg2: memref<1x128xf32, #tpu.memory_space<vmem>>, %arg3: memref<128x128xf32, #tpu.memory_space<vmem>>, %arg4: memref<1x128xf32, #tpu.memory_space<vmem>>, %arg5: memref<128x128xf32, #tpu.memory_space<vmem>>, %arg6: memref<128x128xbf16, #tpu.memory_space<vmem>>) attributes {dimension_semantics = [], scalar_prefetch = 0 : i64, scratch_operands = 1 : i64, tpu.core_type = #tpu.core_type<tc>} {
    %c0 = arith.constant 0 : index
    %c0_0 = arith.constant 0 : index
    %0 = vector.load %arg0[%c0, %c0_0] : memref<128x128xbf16, #tpu.memory_space<vmem>>, vector<128x128xbf16>
    %c0_1 = arith.constant 0 : index
    %c0_2 = arith.constant 0 : index
    %1 = vector.load %arg1[%c0_1, %c0_2] : memref<128x128xbf16, #tpu.memory_space<vmem>>, vector<128x128xbf16>
    %cst = arith.constant dense<0.000000e+00> : vector<128x128xf32>
    %2 = tpu.matmul %0, %1, %cst {dimension_numbers = #tpu.dot_dimension_numbers<[1], [0], [0], [1], [0, 0, 1, 1], [], []>} : vector<128x128xbf16>, vector<128x128xbf16>, vector<128x128xf32> -> vector<128x128xf32>
    %c0_3 = arith.constant 0 : index
    %c0_4 = arith.constant 0 : index
    %3 = vector.load %arg2[%c0_3, %c0_4] : memref<1x128xf32, #tpu.memory_space<vmem>>, vector<1x128xf32>
    %4 = vector.broadcast %3 : vector<1x128xf32> to vector<128x128xf32>
    %5 = arith.addf %2, %4 : vector<128x128xf32>
    %cst_5 = arith.constant 0.000000e+00 : f32
    %6 = vector.broadcast %cst_5 : f32 to vector<128x128xf32>
    %7 = arith.maximumf %5, %6 : vector<128x128xf32>
    %8 = arith.truncf %7 : vector<128x128xf32> to vector<128x128xbf16>
    %c0_6 = arith.constant 0 : index
    %c0_7 = arith.constant 0 : index
    %9 = vector.load %arg6[%c0_6, %c0_7] : memref<128x128xbf16, #tpu.memory_space<vmem>>, vector<128x128xbf16>
    tpu.vector_store %arg6[%c0_6, %c0_7], %8 {strides = array<i32>} : memref<128x128xbf16, #tpu.memory_space<vmem>>, vector<128x128xbf16>,
    %c0_8 = arith.constant 0 : index
    %c0_9 = arith.constant 0 : index
    %10 = vector.load %arg6[%c0_8, %c0_9] : memref<128x128xbf16, #tpu.memory_space<vmem>>, vector<128x128xbf16>
    %cst_10 = arith.constant dense<0.000000e+00> : vector<128x128xf32>
    %11 = tpu.matmul %0, %10, %cst_10 {dimension_numbers = #tpu.dot_dimension_numbers<[1], [0], [0], [1], [0, 0, 1, 1], [], []>} : vector<128x128xbf16>, vector<128x128xbf16>, vector<128x128xf32> -> vector<128x128xf32>
    %c0_11 = arith.constant 0 : index
    %c0_12 = arith.constant 0 : index
    %12 = vector.load %arg3[%c0_11, %c0_12] : memref<128x128xf32, #tpu.memory_space<vmem>>, vector<128x128xf32>
    %cst_13 = arith.constant dense<0.000000e+00> : vector<128x128xf32>
    %13 = tpu.matmul %11, %12, %cst_13 {dimension_numbers = #tpu.dot_dimension_numbers<[1], [0], [0], [1], [0, 0, 1, 1], [], []>} : vector<128x128xf32>, vector<128x128xf32>, vector<128x128xf32> -> vector<128x128xf32>
    %c0_14 = arith.constant 0 : index
    %c0_15 = arith.constant 0 : index
    %14 = vector.load %arg4[%c0_14, %c0_15] : memref<1x128xf32, #tpu.memory_space<vmem>>, vector<1x128xf32>
    %15 = vector.broadcast %14 : vector<1x128xf32> to vector<128x128xf32>
    %16 = arith.addf %13, %15 : vector<128x128xf32>
    %17 = tpu.iota {dimensions = array<i32: 1>} : vector<128x128xi32>
    %c2_i32 = arith.constant 2 : i32
    %18 = vector.broadcast %c2_i32 : i32 to vector<128x128xi32>
    %19 = arith.cmpi slt, %17, %18 : vector<128x128xi32>
    %cst_16 = arith.constant -1.000000e+30 : f32
    %20 = vector.broadcast %cst_16 : f32 to vector<128x128xf32>
    %21 = arith.select %19, %16, %20 : vector<128x128xi1>, vector<128x128xf32>
    %cst_17 = arith.constant dense<0xFF800000> : vector<128xf32>
    %22 = vector.multi_reduction <maximumf>, %21, %cst_17 [1] : vector<128x128xf32> to vector<128xf32>
    %23 = vector.shape_cast %22 : vector<128xf32> to vector<128x1xf32>
    %24 = vector.broadcast %23 : vector<128x1xf32> to vector<128x128xf32>
    %25 = arith.subf %21, %24 : vector<128x128xf32>
    %26 = math.exp %25 : vector<128x128xf32>
    %cst_18 = arith.constant dense<0.000000e+00> : vector<128xf32>
    %27 = vector.multi_reduction <add>, %26, %cst_18 [1] : vector<128x128xf32> to vector<128xf32>
    %28 = vector.shape_cast %27 : vector<128xf32> to vector<128x1xf32>
    %29 = math.log %28 : vector<128x1xf32>
    %30 = vector.broadcast %29 : vector<128x1xf32> to vector<128x128xf32>
    %31 = arith.subf %25, %30 : vector<128x128xf32>
    %c0_19 = arith.constant 0 : index
    %c0_20 = arith.constant 0 : index
    %32 = vector.load %arg5[%c0_19, %c0_20] : memref<128x128xf32, #tpu.memory_space<vmem>>, vector<128x128xf32>
    tpu.vector_store %arg5[%c0_19, %c0_20], %31 {strides = array<i32>} : memref<128x128xf32, #tpu.memory_space<vmem>>, vector<128x128xf32>,
    return
  }
}

</mosaic_0001>

<llo_original>
// kernel: tpu_custom_call.1
$region0: #{tpu_custom_call.1}
  #allocation0 [shape = 'u32[]', space=smem, size = 0x4, offset = 0x4, fixed_abs, tag = 'smem constant byte address 0x4 - core index']
  #allocation1 [shape = 'u32[144,128]{1,0:T(1,128)}', space=vmem, size = 0x12000, scoped, tag = 'internal scratch']
  #allocation2 [shape = 'bf16[128,128]{1,0:T(16,128)(2,1)}', space=vmem, size = 0x8000, scoped, tag = 'scratch operand']
  %s0 = inlined_call_operand.hbm [shape: bf16[128,128], index: 0, kind: input, shape index: {}]
  %s1 = inlined_call_operand.hbm [shape: bf16[128,128], index: 1, kind: input, shape index: {}]
  %s2 = inlined_call_operand.vmem [shape: f32[1,128], index: 2, kind: input, shape index: {}]
  %s3 = inlined_call_operand.hbm [shape: f32[128,128], index: 3, kind: input, shape index: {}]
  %s4 = inlined_call_operand.vmem [shape: f32[1,128], index: 4, kind: input, shape index: {}]
  %s5 = inlined_call_operand.hbm [shape: f32[128,128], index: 5, kind: output, shape index: {}]
  %s6 = sld [smem:[#allocation0]]
  $region42: #{tpu_custom_call.1} parent=0
    _
  %s8 = ssub.s32 1, %s6
  %s9 = scalar_select 0, %s8, %s6
  $region1: #{tpu_custom_call.1} parent=0
    #allocation3 [shape = 'u8[32768]{0}', space=vmem, size = 0x8000, scoped, tag = 'input window, operand 0, single buffered']
    #allocation4 [shape = 's32[1]{0}', space=sflag, size = 0x4, scoped, tag = 'scoped memory for tpu_custom_call.1']
    #allocation5 [shape = 's32[1]{0}', space=sflag, size = 0x4, scoped, tag = 'scoped memory for tpu_custom_call.1']
    #allocation6 [shape = 'u8[32768]{0}', space=vmem, size = 0x8000, scoped, tag = 'input window, operand 1, single buffered']
    #allocation7 [shape = 's32[1]{0}', space=sflag, size = 0x4, scoped, tag = 'scoped memory for tpu_custom_call.1']
    #allocation8 [shape = 'u8[65536]{0}', space=vmem, size = 0x10000, scoped, tag = 'input window, operand 3, single buffered']
    #allocation9 [shape = 'u8[65536]{0}', space=vmem, size = 0x10000, scoped, tag = 'output window, operand 0, single buffered']
    %10 = vsyncpa [#allocation4], 0
    %11 = vsyncpa [#allocation7], 0
    %12 = vsyncpa [#allocation5], 0
    // Predicated region
    $region2: #{tpu_custom_call.1} parent=1 // pred_check
      _
    $region3: #{tpu_custom_call.1} parent=1 // pred_check_branch
      %14 = sbr.rel (0) target = $region5
    $region4: #{tpu_custom_call.1} parent=1 // pred_region
      %s16 = ssub.s32 1024, 1024
      %17 = vsyncadd [#allocation4], %s16
      %s18 = sshll.u32 [#allocation3], 4
      %s19 = int_to_ptr.vmem [resolvable:$true] %s18
      %24 = dma.hbm_to_vmem [thread:$0]  %s0, 1024, %s19, [#allocation4], 64, 64, 4
    $region5: #{tpu_custom_call.1} parent=1 // pred_fallthru
      _
    // Predicated region
    $region6: #{tpu_custom_call.1} parent=1 // pred_check
      _
    $region7: #{tpu_custom_call.1} parent=1 // pred_check_branch
      %26 = sbr.rel (0) target = $region9
    $region8: #{tpu_custom_call.1} parent=1 // pred_region
      %s28 = ssub.s32 1024, 1024
      %29 = vsyncadd [#allocation7], %s28
      %s30 = sshll.u32 [#allocation6], 4
      %s31 = int_to_ptr.vmem [resolvable:$true] %s30
      %36 = dma.hbm_to_vmem [thread:$0]  %s1, 1024, %s31, [#allocation7], 64, 64, 4
    $region9: #{tpu_custom_call.1} parent=1 // pred_fallthru
      _
    // Predicated region
    $region10: #{tpu_custom_call.1} parent=1 // pred_check
      _
    $region11: #{tpu_custom_call.1} parent=1 // pred_check_branch
      %38 = sbr.rel (0) target = $region13
    $region12: #{tpu_custom_call.1} parent=1 // pred_region
      _
    $region13: #{tpu_custom_call.1} parent=1 // pred_fallthru
      _
    // Predicated region
    $region14: #{tpu_custom_call.1} parent=1 // pred_check
      _
    $region15: #{tpu_custom_call.1} parent=1 // pred_check_branch
      %40 = sbr.rel (0) target = $region17
    $region16: #{tpu_custom_call.1} parent=1 // pred_region
      %s42 = ssub.s32 2048, 2048
      %43 = vsyncadd [#allocation7], %s42
      %s44 = sshll.u32 [#allocation8], 4
      %s45 = int_to_ptr.vmem [resolvable:$true] %s44
      %50 = dma.hbm_to_vmem [thread:$0]  %s3, 2048, %s45, [#allocation7], 128, 128, 8
    $region17: #{tpu_custom_call.1} parent=1 // pred_fallthru
      _
    // Predicated region
    $region18: #{tpu_custom_call.1} parent=1 // pred_check
      _
    $region19: #{tpu_custom_call.1} parent=1 // pred_check_branch
      %52 = sbr.rel (0) target = $region21
    $region20: #{tpu_custom_call.1} parent=1 // pred_region
      _
    $region21: #{tpu_custom_call.1} parent=1 // pred_fallthru
      _
    // Predicated region
    $region22: #{tpu_custom_call.1} parent=1 // pred_check
      _
    $region23: #{tpu_custom_call.1} parent=1 // pred_check_branch
      %54 = sbr.rel (0) target = $region25
    $region24: #{tpu_custom_call.1} parent=1 // pred_region
      %55 = dma.done [#allocation4], 1024
    $region25: #{tpu_custom_call.1} parent=1 // pred_fallthru
      _
    // Predicated region
    $region26: #{tpu_custom_call.1} parent=1 // pred_check
      _
    $region27: #{tpu_custom_call.1} parent=1 // pred_check_branch
      %57 = sbr.rel (0) target = $region29
    $region28: #{tpu_custom_call.1} parent=1 // pred_region
      %58 = dma.done [#allocation7], 1024
    $region29: #{tpu_custom_call.1} parent=1 // pred_fallthru
      _
    // Predicated region
    $region30: #{tpu_custom_call.1} parent=1 // pred_check
      _
    $region31: #{tpu_custom_call.1} parent=1 // pred_check_branch
      %60 = sbr.rel (0) target = $region33
    $region32: #{tpu_custom_call.1} parent=1 // pred_region
      %61 = dma.done [#allocation7], 2048
    $region33: #{tpu_custom_call.1} parent=1 // pred_fallthru
      _
    %v63 = vld [vmem:[#allocation3] sm:$0xf]
    %v64 = vld [vmem:[#allocation3 + $0x4] sm:$0xf]
    %v65 = vld [vmem:[#allocation3 + $0x8] sm:$0xf]
    %v66 = vld [vmem:[#allocation3 + $0xc] sm:$0xf]
    %v67 = vld [vmem:[#allocation3 + $0x10] sm:$0xf]
    %v68 = vld [vmem:[#allocation3 + $0x14] sm:$0xf]
    %v69 = vld [vmem:[#allocation3 + $0x18] sm:$0xf]
    %v70 = vld [vmem:[#allocation3 + $0x1c] sm:$0xf]
    %v71 = vld [vmem:[#allocation3 + $0x20] sm:$0xf]
    %v72 = vld [vmem:[#allocation3 + $0x24] sm:$0xf]
    %v73 = vld [vmem:[#allocation3 + $0x28] sm:$0xf]
    %v74 = vld [vmem:[#allocation3 + $0x2c] sm:$0xf]
    %v75 = vld [vmem:[#allocation3 + $0x30] sm:$0xf]
    %v76 = vld [vmem:[#allocation3 + $0x34] sm:$0xf]
    %v77 = vld [vmem:[#allocation3 + $0x38] sm:$0xf]
    %v78 = vld [vmem:[#allocation3 + $0x3c] sm:$0xf]
    %v79 = vld [vmem:[#allocation6] sm:$0xf]
    %v80 = vld [vmem:[#allocation6 + $0x4] sm:$0xf]
    %v81 = vld [vmem:[#allocation6 + $0x8] sm:$0xf]
    %v82 = vld [vmem:[#allocation6 + $0xc] sm:$0xf]
    %v83 = vld [vmem:[#allocation6 + $0x10] sm:$0xf]
    %v84 = vld [vmem:[#allocation6 + $0x14] sm:$0xf]
    %v85 = vld [vmem:[#allocation6 + $0x18] sm:$0xf]
    %v86 = vld [vmem:[#allocation6 + $0x1c] sm:$0xf]
    %v87 = vld [vmem:[#allocation6 + $0x20] sm:$0xf]
    %v88 = vld [vmem:[#allocation6 + $0x24] sm:$0xf]
    %v89 = vld [vmem:[#allocation6 + $0x28] sm:$0xf]
    %v90 = vld [vmem:[#allocation6 + $0x2c] sm:$0xf]
    %v91 = vld [vmem:[#allocation6 + $0x30] sm:$0xf]
    %v92 = vld [vmem:[#allocation6 + $0x34] sm:$0xf]
    %v93 = vld [vmem:[#allocation6 + $0x38] sm:$0xf]
    %v94 = vld [vmem:[#allocation6 + $0x3c] sm:$0xf]
    %v95 = vld [vmem:[%s2] sm:$0x1]
    %v97 = vlaneseq
    %v98 = vshrl.u32 %v97, 7
    %v99 = vsub.s32 0, %v98
    %v100 = vrot.slane %v95, %v99
    %v118 = vunpack.c.l.b16 %v63
    %v119 = vunpack.c.l.b16 %v64
    %v120 = vunpack.c.l.b16 %v65
    %v121 = vunpack.c.l.b16 %v66
    %v122 = vunpack.c.l.b16 %v67
    %v123 = vunpack.c.l.b16 %v68
    %v124 = vunpack.c.l.b16 %v69
    %v125 = vunpack.c.l.b16 %v70
    %v126 = vunpack.c.l.b16 %v71
    %v127 = vunpack.c.l.b16 %v72
    %v128 = vunpack.c.l.b16 %v73
    %v129 = vunpack.c.l.b16 %v74
    %v130 = vunpack.c.l.b16 %v75
    %v131 = vunpack.c.l.b16 %v76
    %v132 = vunpack.c.l.b16 %v77
    %v133 = vunpack.c.l.b16 %v78
    %v134 = vpack.c.b16 %v119, %v118
    %v135 = vpack.c.b16 %v121, %v120
    %v136 = vpack.c.b16 %v123, %v122
    %v137 = vpack.c.b16 %v125, %v124
    %v138 = vpack.c.b16 %v127, %v126
    %v139 = vpack.c.b16 %v129, %v128
    %v140 = vpack.c.b16 %v131, %v130
    %v141 = vpack.c.b16 %v133, %v132
    %v166 = vunpack.c.l.b16 %v79
    %v167 = vunpack.c.l.b16 %v80
    %v168 = vunpack.c.l.b16 %v81
    %v169 = vunpack.c.l.b16 %v82
    %v170 = vunpack.c.l.b16 %v83
    %v171 = vunpack.c.l.b16 %v84
    %v172 = vunpack.c.l.b16 %v85
    %v173 = vunpack.c.l.b16 %v86
    %v174 = vunpack.c.l.b16 %v87
    %v175 = vunpack.c.l.b16 %v88
    %v176 = vunpack.c.l.b16 %v89
    %v177 = vunpack.c.l.b16 %v90
    %v178 = vunpack.c.l.b16 %v91
    %v179 = vunpack.c.l.b16 %v92
    %v180 = vunpack.c.l.b16 %v93
    %v181 = vunpack.c.l.b16 %v94
    %v182 = vpack.c.b16 %v167, %v166
    %v183 = vpack.c.b16 %v169, %v168
    %v184 = vpack.c.b16 %v171, %v170
    %v185 = vpack.c.b16 %v173, %v172
    %v186 = vpack.c.b16 %v175, %v174
    %v187 = vpack.c.b16 %v177, %v176
    %v188 = vpack.c.b16 %v179, %v178
    %v189 = vpack.c.b16 %v181, %v180
    %198 = vmatprep.subr.bf16.mxu0 0
    %199 = vmatpush1.bf16.msra.mxu0 %v182
    %200 = vmatprep.subr.bf16.mxu0 0
    %201 = vmatpush1.bf16.msra.mxu0 %v183
    %202 = vmatprep.subr.bf16.mxu0 0
    %203 = vmatpush1.bf16.msra.mxu0 %v184
    %204 = vmatprep.subr.bf16.mxu0 0
    %205 = vmatpush1.bf16.msra.mxu0 %v185
    %206 = vmatprep.subr.bf16.mxu0 0
    %207 = vmatpush1.bf16.msra.mxu0 %v186
    %208 = vmatprep.subr.bf16.mxu0 0
    %209 = vmatpush1.bf16.msra.mxu0 %v187
    %210 = vmatprep.subr.bf16.mxu0 0
    %211 = vmatpush1.bf16.msra.mxu0 %v188
    %212 = vmatprep.subr.bf16.mxu0 0
    %213 = vmatpush1.bf16.msra.mxu0 %v189
    %214 = vmatprep.subr.bf16.mxu0 0
    %215 = vmatpush1.bf16.msra.mxu0 0
    %216 = vmatprep.subr.bf16.mxu0 0
    %217 = vmatpush1.bf16.msra.mxu0 0
    %218 = vmatprep.subr.bf16.mxu0 0
    %219 = vmatpush1.bf16.msra.mxu0 0
    %220 = vmatprep.subr.bf16.mxu0 0
    %221 = vmatpush1.bf16.msra.mxu0 0
    %222 = vmatprep.subr.bf16.mxu0 0
    %223 = vmatpush1.bf16.msra.mxu0 0
    %224 = vmatprep.subr.bf16.mxu0 0
    %225 = vmatpush1.bf16.msra.mxu0 0
    %226 = vmatprep.subr.bf16.mxu0 0
    %227 = vmatpush1.bf16.msra.mxu0 0
    %228 = vmatprep.subr.bf16.mxu0 0
    %229 = vmatpush1.bf16.msra.mxu0 0
    %230 = vmatprep.mubr.bf16.mxu0 0
    %231 = vmatmul.mubr.bf16.gmra.mrb[0].mxu0 %v134
    %v232 = vpop.f32.mrb[0].mxu0
    %v233 = vadd.f32 %v100, %v232
    %v234 = vpop.f32.mrb[0].mxu0
    %v235 = vpop.f32.mrb[0].mxu0
    %v236 = vadd.f32 %v100, %v235
    %v237 = vpop.f32.mrb[0].mxu0
    %238 = vmatprep.mubr.bf16.mxu0 0
    %239 = vmatmul.mubr.bf16.gmra.mrb[0].mxu0 %v135
    %v240 = vpop.f32.mrb[0].mxu0
    %v241 = vadd.f32 %v100, %v240
    %v242 = vpop.f32.mrb[0].mxu0
    %v243 = vpop.f32.mrb[0].mxu0
    %v244 = vadd.f32 %v100, %v243
    %v245 = vpop.f32.mrb[0].mxu0
    %246 = vmatprep.mubr.bf16.mxu0 0
    %247 = vmatmul.mubr.bf16.gmra.mrb[0].mxu0 %v136
    %v248 = vpop.f32.mrb[0].mxu0
    %v249 = vadd.f32 %v100, %v248
    %v250 = vpop.f32.mrb[0].mxu0
    %v251 = vpop.f32.mrb[0].mxu0
    %v252 = vadd.f32 %v100, %v251
    %v253 = vpop.f32.mrb[0].mxu0
    %254 = vmatprep.mubr.bf16.mxu0 0
    %255 = vmatmul.mubr.bf16.gmra.mrb[0].mxu0 %v137
    %v256 = vpop.f32.mrb[0].mxu0
    %v257 = vadd.f32 %v100, %v256
    %v258 = vpop.f32.mrb[0].mxu0
    %v259 = vpop.f32.mrb[0].mxu0
    %v260 = vadd.f32 %v100, %v259
    %v261 = vpop.f32.mrb[0].mxu0
    %262 = vmatprep.mubr.bf16.mxu0 0
    %263 = vmatmul.mubr.bf16.gmra.mrb[0].mxu0 %v138
    %v264 = vpop.f32.mrb[0].mxu0
    %v265 = vadd.f32 %v100, %v264
    %v266 = vpop.f32.mrb[0].mxu0
    %v267 = vpop.f32.mrb[0].mxu0
    %v268 = vadd.f32 %v100, %v267
    %v269 = vpop.f32.mrb[0].mxu0
    %270 = vmatprep.mubr.bf16.mxu0 0
    %271 = vmatmul.mubr.bf16.gmra.mrb[0].mxu0 %v139
    %v272 = vpop.f32.mrb[0].mxu0
    %v273 = vadd.f32 %v100, %v272
    %v274 = vpop.f32.mrb[0].mxu0
    %v275 = vpop.f32.mrb[0].mxu0
    %v276 = vadd.f32 %v100, %v275
    %v277 = vpop.f32.mrb[0].mxu0
    %278 = vmatprep.mubr.bf16.mxu0 0
    %279 = vmatmul.mubr.bf16.gmra.mrb[0].mxu0 %v140
    %v280 = vpop.f32.mrb[0].mxu0
    %v281 = vadd.f32 %v100, %v280
    %v282 = vpop.f32.mrb[0].mxu0
    %v283 = vpop.f32.mrb[0].mxu0
    %v284 = vadd.f32 %v100, %v283
    %v285 = vpop.f32.mrb[0].mxu0
    %286 = vmatprep.mubr.bf16.mxu0 0
    %287 = vmatmul.mubr.bf16.gmra.mrb[0].mxu0 %v141
    %v288 = vpop.f32.mrb[0].mxu0
    %v289 = vadd.f32 %v100, %v288
    %v290 = vpop.f32.mrb[0].mxu0
    %v291 = vpop.f32.mrb[0].mxu0
    %v292 = vadd.f32 %v100, %v291
    %v293 = vpop.f32.mrb[0].mxu0
    %294 = vdwg.mxu0
    %v295 = vmax.f32 %v233, 0.0
    %v296 = vmax.f32 %v236, 0.0
    %v297 = vmax.f32 %v241, 0.0
    %v298 = vmax.f32 %v244, 0.0
    %v299 = vmax.f32 %v249, 0.0
    %v300 = vmax.f32 %v252, 0.0
    %v301 = vmax.f32 %v257, 0.0
    %v302 = vmax.f32 %v260, 0.0
    %v303 = vmax.f32 %v265, 0.0
    %v304 = vmax.f32 %v268, 0.0
    %v305 = vmax.f32 %v273, 0.0
    %v306 = vmax.f32 %v276, 0.0
    %v307 = vmax.f32 %v281, 0.0
    %v308 = vmax.f32 %v284, 0.0
    %v309 = vmax.f32 %v289, 0.0
    %v310 = vmax.f32 %v292, 0.0
    %v311 = vpack.c.bf16 %v296, %v295
    %v312 = vpack.c.bf16 %v298, %v297
    %v313 = vpack.c.bf16 %v300, %v299
    %v314 = vpack.c.bf16 %v302, %v301
    %v315 = vpack.c.bf16 %v304, %v303
    %v316 = vpack.c.bf16 %v306, %v305
    %v317 = vpack.c.bf16 %v308, %v307
    %v318 = vpack.c.bf16 %v310, %v309
    %319 = vst [vmem:[#allocation2] sm:$0xff] %v311
    %320 = vst [vmem:[#allocation2 + $0x8] sm:$0xff] %v312
    %321 = vst [vmem:[#allocation2 + $0x10] sm:$0xff] %v313
    %322 = vst [vmem:[#allocation2 + $0x18] sm:$0xff] %v314
    %323 = vst [vmem:[#allocation2 + $0x20] sm:$0xff] %v315
    %324 = vst [vmem:[#allocation2 + $0x28] sm:$0xff] %v316
    %325 = vst [vmem:[#allocation2 + $0x30] sm:$0xff] %v317
    %326 = vst [vmem:[#allocation2 + $0x38] sm:$0xff] %v318
    %v327 = vld [vmem:[#allocation2] sm:$0xff]
    %v328 = vld [vmem:[#allocation2 + $0x8] sm:$0xff]
    %v329 = vld [vmem:[#allocation2 + $0x10] sm:$0xff]
    %v330 = vld [vmem:[#allocation2 + $0x18] sm:$0xff]
    %v331 = vld [vmem:[#allocation2 + $0x20] sm:$0xff]
    %v332 = vld [vmem:[#allocation2 + $0x28] sm:$0xff]
    %v333 = vld [vmem:[#allocation2 + $0x30] sm:$0xff]
    %v334 = vld [vmem:[#allocation2 + $0x38] sm:$0xff]
    %335 = vmatprep.subr.bf16.mxu0 0
    %336 = vmatpush1.bf16.msra.mxu0 %v327
    %337 = vmatprep.subr.bf16.mxu0 0
    %338 = vmatpush1.bf16.msra.mxu0 %v328
    %339 = vmatprep.subr.bf16.mxu0 0
    %340 = vmatpush1.bf16.msra.mxu0 %v329
    %341 = vmatprep.subr.bf16.mxu0 0
    %342 = vmatpush1.bf16.msra.mxu0 %v330
    %343 = vmatprep.subr.bf16.mxu0 0
    %344 = vmatpush1.bf16.msra.mxu0 %v331
    %345 = vmatprep.subr.bf16.mxu0 0
    %346 = vmatpush1.bf16.msra.mxu0 %v332
    %347 = vmatprep.subr.bf16.mxu0 0
    %348 = vmatpush1.bf16.msra.mxu0 %v333
    %349 = vmatprep.subr.bf16.mxu0 0
    %350 = vmatpush1.bf16.msra.mxu0 %v334
    %351 = vmatprep.subr.bf16.mxu0 0
    %352 = vmatpush1.bf16.msra.mxu0 0
    %353 = vmatprep.subr.bf16.mxu0 0
    %354 = vmatpush1.bf16.msra.mxu0 0
    %355 = vmatprep.subr.bf16.mxu0 0
    %356 = vmatpush1.bf16.msra.mxu0 0
    %357 = vmatprep.subr.bf16.mxu0 0
    %358 = vmatpush1.bf16.msra.mxu0 0
    %359 = vmatprep.subr.bf16.mxu0 0
    %360 = vmatpush1.bf16.msra.mxu0 0
    %361 = vmatprep.subr.bf16.mxu0 0
    %362 = vmatpush1.bf16.msra.mxu0 0
    %363 = vmatprep.subr.bf16.mxu0 0
    %364 = vmatpush1.bf16.msra.mxu0 0
    %365 = vmatprep.subr.bf16.mxu0 0
    %366 = vmatpush1.bf16.msra.mxu0 0
    %367 = vmatprep.mubr.bf16.mxu0 0
    %368 = vmatmul.mubr.bf16.gmra.mrb[0].mxu0 %v134
    %v369 = vpop.f32.mrb[0].mxu0
    %v370 = vadd.f32 0.0, %v369
    %v371 = vpop.f32.mrb[0].mxu0
    %v372 = vpop.f32.mrb[0].mxu0
    %v373 = vadd.f32 0.0, %v372
    %v374 = vpop.f32.mrb[0].mxu0
    %375 = vmatprep.mubr.bf16.mxu0 0
    %376 = vmatmul.mubr.bf16.gmra.mrb[0].mxu0 %v135
    %v377 = vpop.f32.mrb[0].mxu0
    %v378 = vadd.f32 0.0, %v377
    %v379 = vpop.f32.mrb[0].mxu0
    %v380 = vpop.f32.mrb[0].mxu0
    %v381 = vadd.f32 0.0, %v380
    %v382 = vpop.f32.mrb[0].mxu0
    %383 = vmatprep.mubr.bf16.mxu0 0
    %384 = vmatmul.mubr.bf16.gmra.mrb[0].mxu0 %v136
    %v385 = vpop.f32.mrb[0].mxu0
    %v386 = vadd.f32 0.0, %v385
    %v387 = vpop.f32.mrb[0].mxu0
    %v388 = vpop.f32.mrb[0].mxu0
    %v389 = vadd.f32 0.0, %v388
    %v390 = vpop.f32.mrb[0].mxu0
    %391 = vmatprep.mubr.bf16.mxu0 0
    %392 = vmatmul.mubr.bf16.gmra.mrb[0].mxu0 %v137
    %v393 = vpop.f32.mrb[0].mxu0
    %v394 = vadd.f32 0.0, %v393
    %v395 = vpop.f32.mrb[0].mxu0
    %v396 = vpop.f32.mrb[0].mxu0
    %v397 = vadd.f32 0.0, %v396
    %v398 = vpop.f32.mrb[0].mxu0
    %399 = vmatprep.mubr.bf16.mxu0 0
    %400 = vmatmul.mubr.bf16.gmra.mrb[0].mxu0 %v138
    %v401 = vpop.f32.mrb[0].mxu0
    %v402 = vadd.f32 0.0, %v401
    %v403 = vpop.f32.mrb[0].mxu0
    %v404 = vpop.f32.mrb[0].mxu0
    %v405 = vadd.f32 0.0, %v404
    %v406 = vpop.f32.mrb[0].mxu0
    %407 = vmatprep.mubr.bf16.mxu0 0
    %408 = vmatmul.mubr.bf16.gmra.mrb[0].mxu0 %v139
    %v409 = vpop.f32.mrb[0].mxu0
    %v410 = vadd.f32 0.0, %v409
    %v411 = vpop.f32.mrb[0].mxu0
    %v412 = vpop.f32.mrb[0].mxu0
    %v413 = vadd.f32 0.0, %v412
    %v414 = vpop.f32.mrb[0].mxu0
    %415 = vmatprep.mubr.bf16.mxu0 0
    %416 = vmatmul.mubr.bf16.gmra.mrb[0].mxu0 %v140
    %v417 = vpop.f32.mrb[0].mxu0
    %v418 = vadd.f32 0.0, %v417
    %v419 = vpop.f32.mrb[0].mxu0
    %v420 = vpop.f32.mrb[0].mxu0
    %v421 = vadd.f32 0.0, %v420
    %v422 = vpop.f32.mrb[0].mxu0
    %423 = vmatprep.mubr.bf16.mxu0 0
    %424 = vmatmul.mubr.bf16.gmra.mrb[0].mxu0 %v141
    %v425 = vpop.f32.mrb[0].mxu0
    %v426 = vadd.f32 0.0, %v425
    %v427 = vpop.f32.mrb[0].mxu0
    %v428 = vpop.f32.mrb[0].mxu0
    %v429 = vadd.f32 0.0, %v428
    %v430 = vpop.f32.mrb[0].mxu0
    %431 = vdwg.mxu0
    %v432 = vld [vmem:[#allocation8] sm:$0xff]
    %v433 = vld [vmem:[#allocation8 + $0x8] sm:$0xff]
    %v434 = vld [vmem:[#allocation8 + $0x10] sm:$0xff]
    %v435 = vld [vmem:[#allocation8 + $0x18] sm:$0xff]
    %v436 = vld [vmem:[#allocation8 + $0x20] sm:$0xff]
    %v437 = vld [vmem:[#allocation8 + $0x28] sm:$0xff]
    %v438 = vld [vmem:[#allocation8 + $0x30] sm:$0xff]
    %v439 = vld [vmem:[#allocation8 + $0x38] sm:$0xff]
    %v440 = vld [vmem:[#allocation8 + $0x40] sm:$0xff]
    %v441 = vld [vmem:[#allocation8 + $0x48] sm:$0xff]
    %v442 = vld [vmem:[#allocation8 + $0x50] sm:$0xff]
    %v443 = vld [vmem:[#allocation8 + $0x58] sm:$0xff]
    %v444 = vld [vmem:[#allocation8 + $0x60] sm:$0xff]
    %v445 = vld [vmem:[#allocation8 + $0x68] sm:$0xff]
    %v446 = vld [vmem:[#allocation8 + $0x70] sm:$0xff]
    %v447 = vld [vmem:[#allocation8 + $0x78] sm:$0xff]
    %v448 = vld [vmem:[%s4] sm:$0x1]
    %v450 = vlaneseq
    %v451 = vshrl.u32 %v450, 7
    %v452 = vsub.s32 0, %v451
    %v453 = vrot.slane %v448, %v452
    %455 = vmatprep.subr.mxu0 0.0
    %456 = vmatpush1.msra.mxu0 %v432
    %457 = vmatprep.subr.mxu0 0.0
    %458 = vmatpush1.msra.mxu0 %v433
    %459 = vmatprep.subr.mxu0 0.0
    %460 = vmatpush1.msra.mxu0 %v434
    %461 = vmatprep.subr.mxu0 0.0
    %462 = vmatpush1.msra.mxu0 %v435
    %463 = vmatprep.subr.mxu0 0.0
    %464 = vmatpush1.msra.mxu0 %v436
    %465 = vmatprep.subr.mxu0 0.0
    %466 = vmatpush1.msra.mxu0 %v437
    %467 = vmatprep.subr.mxu0 0.0
    %468 = vmatpush1.msra.mxu0 %v438
    %469 = vmatprep.subr.mxu0 0.0
    %470 = vmatpush1.msra.mxu0 %v439
    %471 = vmatprep.subr.mxu0 0.0
    %472 = vmatpush1.msra.mxu0 %v440
    %473 = vmatprep.subr.mxu0 0.0
    %474 = vmatpush1.msra.mxu0 %v441
    %475 = vmatprep.subr.mxu0 0.0
    %476 = vmatpush1.msra.mxu0 %v442
    %477 = vmatprep.subr.mxu0 0.0
    %478 = vmatpush1.msra.mxu0 %v443
    %479 = vmatprep.subr.mxu0 0.0
    %480 = vmatpush1.msra.mxu0 %v444
    %481 = vmatprep.subr.mxu0 0.0
    %482 = vmatpush1.msra.mxu0 %v445
    %483 = vmatprep.subr.mxu0 0.0
    %484 = vmatpush1.msra.mxu0 %v446
    %485 = vmatprep.subr.mxu0 0.0
    %486 = vmatpush1.msra.mxu0 %v447
    %487 = vmatprep.subr.mxu0 0.0
    %488 = vmatpush1.msra.mxu0 0.0
    %489 = vmatprep.subr.mxu0 0.0
    %490 = vmatpush1.msra.mxu0 0.0
    %491 = vmatprep.subr.mxu0 0.0
    %492 = vmatpush1.msra.mxu0 0.0
    %493 = vmatprep.subr.mxu0 0.0
    %494 = vmatpush1.msra.mxu0 0.0
    %495 = vmatprep.subr.mxu0 0.0
    %496 = vmatpush1.msra.mxu0 0.0
    %497 = vmatprep.subr.mxu0 0.0
    %498 = vmatpush1.msra.mxu0 0.0
    %499 = vmatprep.subr.mxu0 0.0
    %500 = vmatpush1.msra.mxu0 0.0
    %501 = vmatprep.subr.mxu0 0.0
    %502 = vmatpush1.msra.mxu0 0.0
    %503 = vmatprep.subr.mxu0 0.0
    %504 = vmatpush1.msra.mxu0 0.0
    %505 = vmatprep.subr.mxu0 0.0
    %506 = vmatpush1.msra.mxu0 0.0
    %507 = vmatprep.subr.mxu0 0.0
    %508 = vmatpush1.msra.mxu0 0.0
    %509 = vmatprep.subr.mxu0 0.0
    %510 = vmatpush1.msra.mxu0 0.0
    %511 = vmatprep.subr.mxu0 0.0
    %512 = vmatpush1.msra.mxu0 0.0
    %513 = vmatprep.subr.mxu0 0.0
    %514 = vmatpush1.msra.mxu0 0.0
    %515 = vmatprep.subr.mxu0 0.0
    %516 = vmatpush1.msra.mxu0 0.0
    %517 = vmatprep.subr.mxu0 0.0
    %518 = vmatpush1.msra.mxu0 0.0
    %519 = vmatprep.mubr.f32.mxu0 0.0
    %520 = vmatmul.mubr.f32.gmra.mrb[0].mxu0 %v370
    %v521 = vpop.f32.mrb[0].mxu0
    %v522 = vadd.f32 %v453, %v521
    %v523 = vpop.f32.mrb[0].mxu0
    %524 = vmatprep.mubr.f32.mxu0 0.0
    %525 = vmatmul.mubr.f32.gmra.mrb[0].mxu0 %v373
    %v526 = vpop.f32.mrb[0].mxu0
    %v527 = vadd.f32 %v453, %v526
    %v528 = vpop.f32.mrb[0].mxu0
    %529 = vmatprep.mubr.f32.mxu0 0.0
    %530 = vmatmul.mubr.f32.gmra.mrb[0].mxu0 %v378
    %v531 = vpop.f32.mrb[0].mxu0
    %v532 = vadd.f32 %v453, %v531
    %v533 = vpop.f32.mrb[0].mxu0
    %534 = vmatprep.mubr.f32.mxu0 0.0
    %535 = vmatmul.mubr.f32.gmra.mrb[0].mxu0 %v381
    %v536 = vpop.f32.mrb[0].mxu0
    %v537 = vadd.f32 %v453, %v536
    %v538 = vpop.f32.mrb[0].mxu0
    %539 = vmatprep.mubr.f32.mxu0 0.0
    %540 = vmatmul.mubr.f32.gmra.mrb[0].mxu0 %v386
    %v541 = vpop.f32.mrb[0].mxu0
    %v542 = vadd.f32 %v453, %v541
    %v543 = vpop.f32.mrb[0].mxu0
    %544 = vmatprep.mubr.f32.mxu0 0.0
    %545 = vmatmul.mubr.f32.gmra.mrb[0].mxu0 %v389
    %v546 = vpop.f32.mrb[0].mxu0
    %v547 = vadd.f32 %v453, %v546
    %v548 = vpop.f32.mrb[0].mxu0
    %549 = vmatprep.mubr.f32.mxu0 0.0
    %550 = vmatmul.mubr.f32.gmra.mrb[0].mxu0 %v394
    %v551 = vpop.f32.mrb[0].mxu0
    %v552 = vadd.f32 %v453, %v551
    %v553 = vpop.f32.mrb[0].mxu0
    %554 = vmatprep.mubr.f32.mxu0 0.0
    %555 = vmatmul.mubr.f32.gmra.mrb[0].mxu0 %v397
    %v556 = vpop.f32.mrb[0].mxu0
    %v557 = vadd.f32 %v453, %v556
    %v558 = vpop.f32.mrb[0].mxu0
    %559 = vmatprep.mubr.f32.mxu0 0.0
    %560 = vmatmul.mubr.f32.gmra.mrb[0].mxu0 %v402
    %v561 = vpop.f32.mrb[0].mxu0
    %v562 = vadd.f32 %v453, %v561
    %v563 = vpop.f32.mrb[0].mxu0
    %564 = vmatprep.mubr.f32.mxu0 0.0
    %565 = vmatmul.mubr.f32.gmra.mrb[0].mxu0 %v405
    %v566 = vpop.f32.mrb[0].mxu0
    %v567 = vadd.f32 %v453, %v566
    %v568 = vpop.f32.mrb[0].mxu0
    %569 = vmatprep.mubr.f32.mxu0 0.0
    %570 = vmatmul.mubr.f32.gmra.mrb[0].mxu0 %v410
    %v571 = vpop.f32.mrb[0].mxu0
    %v572 = vadd.f32 %v453, %v571
    %v573 = vpop.f32.mrb[0].mxu0
    %574 = vmatprep.mubr.f32.mxu0 0.0
    %575 = vmatmul.mubr.f32.gmra.mrb[0].mxu0 %v413
    %v576 = vpop.f32.mrb[0].mxu0
    %v577 = vadd.f32 %v453, %v576
    %v578 = vpop.f32.mrb[0].mxu0
    %579 = vmatprep.mubr.f32.mxu0 0.0
    %580 = vmatmul.mubr.f32.gmra.mrb[0].mxu0 %v418
    %v581 = vpop.f32.mrb[0].mxu0
    %v582 = vadd.f32 %v453, %v581
    %v583 = vpop.f32.mrb[0].mxu0
    %584 = vmatprep.mubr.f32.mxu0 0.0
    %585 = vmatmul.mubr.f32.gmra.mrb[0].mxu0 %v421
    %v586 = vpop.f32.mrb[0].mxu0
    %v587 = vadd.f32 %v453, %v586
    %v588 = vpop.f32.mrb[0].mxu0
    %589 = vmatprep.mubr.f32.mxu0 0.0
    %590 = vmatmul.mubr.f32.gmra.mrb[0].mxu0 %v426
    %v591 = vpop.f32.mrb[0].mxu0
    %v592 = vadd.f32 %v453, %v591
    %v593 = vpop.f32.mrb[0].mxu0
    %594 = vmatprep.mubr.f32.mxu0 0.0
    %595 = vmatmul.mubr.f32.gmra.mrb[0].mxu0 %v429
    %v596 = vpop.f32.mrb[0].mxu0
    %v597 = vadd.f32 %v453, %v596
    %v598 = vpop.f32.mrb[0].mxu0
    %599 = vdwg.mxu0
    %v600 = vlaneseq
    %v601 = vand.u32 %v600, 127
    %vm602 = vcmp.lt.s32.totalorder %v601, 2
    %v603 = vsel %vm602, %v522, -1e+30
    %v604 = vsel %vm602, %v527, -1e+30
    %v605 = vsel %vm602, %v532, -1e+30
    %v606 = vsel %vm602, %v537, -1e+30
    %v607 = vsel %vm602, %v542, -1e+30
    %v608 = vsel %vm602, %v547, -1e+30
    %v609 = vsel %vm602, %v552, -1e+30
    %v610 = vsel %vm602, %v557, -1e+30
    %v611 = vsel %vm602, %v562, -1e+30
    %v612 = vsel %vm602, %v567, -1e+30
    %v613 = vsel %vm602, %v572, -1e+30
    %v614 = vsel %vm602, %v577, -1e+30
    %v615 = vsel %vm602, %v582, -1e+30
    %v616 = vsel %vm602, %v587, -1e+30
    %v617 = vsel %vm602, %v592, -1e+30
    %v618 = vsel %vm602, %v597, -1e+30
    %619 = vmax.xlane.f32.xlu0 %v603
    %v620 = vpop.xlane.xlu0 %619
    %621 = vmax.xlane.f32.xlu0 %v604
    %v622 = vpop.xlane.xlu0 %621
    %623 = vmax.xlane.f32.xlu0 %v605
    %v624 = vpop.xlane.xlu0 %623
    %625 = vmax.xlane.f32.xlu0 %v606
    %v626 = vpop.xlane.xlu0 %625
    %627 = vmax.xlane.f32.xlu0 %v607
    %v628 = vpop.xlane.xlu0 %627
    %629 = vmax.xlane.f32.xlu0 %v608
    %v630 = vpop.xlane.xlu0 %629
    %631 = vmax.xlane.f32.xlu0 %v609
    %v632 = vpop.xlane.xlu0 %631
    %633 = vmax.xlane.f32.xlu0 %v610
    %v634 = vpop.xlane.xlu0 %633
    %635 = vmax.xlane.f32.xlu0 %v611
    %v636 = vpop.xlane.xlu0 %635
    %637 = vmax.xlane.f32.xlu0 %v612
    %v638 = vpop.xlane.xlu0 %637
    %639 = vmax.xlane.f32.xlu0 %v613
    %v640 = vpop.xlane.xlu0 %639
    %641 = vmax.xlane.f32.xlu0 %v614
    %v642 = vpop.xlane.xlu0 %641
    %643 = vmax.xlane.f32.xlu0 %v615
    %v644 = vpop.xlane.xlu0 %643
    %645 = vmax.xlane.f32.xlu0 %v616
    %v646 = vpop.xlane.xlu0 %645
    %647 = vmax.xlane.f32.xlu0 %v617
    %v648 = vpop.xlane.xlu0 %647
    %649 = vmax.xlane.f32.xlu0 %v618
    %v650 = vpop.xlane.xlu0 %649
    %v651 = vsub.f32 %v603, %v620
    %v652 = vsub.f32 %v604, %v622
    %v653 = vsub.f32 %v605, %v624
    %v654 = vsub.f32 %v606, %v626
    %v655 = vsub.f32 %v607, %v628
    %v656 = vsub.f32 %v608, %v630
    %v657 = vsub.f32 %v609, %v632
    %v658 = vsub.f32 %v610, %v634
    %v659 = vsub.f32 %v611, %v636
    %v660 = vsub.f32 %v612, %v638
    %v661 = vsub.f32 %v613, %v640
    %v662 = vsub.f32 %v614, %v642
    %v663 = vsub.f32 %v615, %v644
    %v664 = vsub.f32 %v616, %v646
    %v665 = vsub.f32 %v617, %v648
    %v666 = vsub.f32 %v618, %v650
    %v667 = vmul.f32 %v651, 1.442695
    %v668 = vpow.pop %v667
    %v669 = vmul.f32 %v652, 1.442695
    %v670 = vpow.pop %v669
    %v671 = vmul.f32 %v653, 1.442695
    %v672 = vpow.pop %v671
    %v673 = vmul.f32 %v654, 1.442695
    %v674 = vpow.pop %v673
    %v675 = vmul.f32 %v655, 1.442695
    %v676 = vpow.pop %v675
    %v677 = vmul.f32 %v656, 1.442695
    %v678 = vpow.pop %v677
    %v679 = vmul.f32 %v657, 1.442695
    %v680 = vpow.pop %v679
    %v681 = vmul.f32 %v658, 1.442695
    %v682 = vpow.pop %v681
    %v683 = vmul.f32 %v659, 1.442695
    %v684 = vpow.pop %v683
    %v685 = vmul.f32 %v660, 1.442695
    %v686 = vpow.pop %v685
    %v687 = vmul.f32 %v661, 1.442695
    %v688 = vpow.pop %v687
    %v689 = vmul.f32 %v662, 1.442695
    %v690 = vpow.pop %v689
    %v691 = vmul.f32 %v663, 1.442695
    %v692 = vpow.pop %v691
    %v693 = vmul.f32 %v664, 1.442695
    %v694 = vpow.pop %v693
    %v695 = vmul.f32 %v665, 1.442695
    %v696 = vpow.pop %v695
    %v697 = vmul.f32 %v666, 1.442695
    %v698 = vpow.pop %v697
    %699 = vadd.xlane.f32.xlu0 %v668
    %v700 = vpop.xlane.xlu0 %699
    %701 = vadd.xlane.f32.xlu0 %v670
    %v702 = vpop.xlane.xlu0 %701
    %703 = vadd.xlane.f32.xlu0 %v672
    %v704 = vpop.xlane.xlu0 %703
    %705 = vadd.xlane.f32.xlu0 %v674
    %v706 = vpop.xlane.xlu0 %705
    %707 = vadd.xlane.f32.xlu0 %v676
    %v708 = vpop.xlane.xlu0 %707
    %709 = vadd.xlane.f32.xlu0 %v678
    %v710 = vpop.xlane.xlu0 %709
    %711 = vadd.xlane.f32.xlu0 %v680
    %v712 = vpop.xlane.xlu0 %711
    %713 = vadd.xlane.f32.xlu0 %v682
    %v714 = vpop.xlane.xlu0 %713
    %715 = vadd.xlane.f32.xlu0 %v684
    %v716 = vpop.xlane.xlu0 %715
    %717 = vadd.xlane.f32.xlu0 %v686
    %v718 = vpop.xlane.xlu0 %717
    %719 = vadd.xlane.f32.xlu0 %v688
    %v720 = vpop.xlane.xlu0 %719
    %721 = vadd.xlane.f32.xlu0 %v690
    %v722 = vpop.xlane.xlu0 %721
    %723 = vadd.xlane.f32.xlu0 %v692
    %v724 = vpop.xlane.xlu0 %723
    %725 = vadd.xlane.f32.xlu0 %v694
    %v726 = vpop.xlane.xlu0 %725
    %727 = vadd.xlane.f32.xlu0 %v696
    %v728 = vpop.xlane.xlu0 %727
    %729 = vadd.xlane.f32.xlu0 %v698
    %v730 = vpop.xlane.xlu0 %729
    %v731 = vlog2.pop %v700
    %v732 = vmul.f32 %v731, 0.6931472
    %v733 = vlog2.pop %v702
    %v734 = vmul.f32 %v733, 0.6931472
    %v735 = vlog2.pop %v704
    %v736 = vmul.f32 %v735, 0.6931472
    %v737 = vlog2.pop %v706
    %v738 = vmul.f32 %v737, 0.6931472
    %v739 = vlog2.pop %v708
    %v740 = vmul.f32 %v739, 0.6931472
    %v741 = vlog2.pop %v710
    %v742 = vmul.f32 %v741, 0.6931472
    %v743 = vlog2.pop %v712
    %v744 = vmul.f32 %v743, 0.6931472
    %v745 = vlog2.pop %v714
    %v746 = vmul.f32 %v745, 0.6931472
    %v747 = vlog2.pop %v716
    %v748 = vmul.f32 %v747, 0.6931472
    %v749 = vlog2.pop %v718
    %v750 = vmul.f32 %v749, 0.6931472
    %v751 = vlog2.pop %v720
    %v752 = vmul.f32 %v751, 0.6931472
    %v753 = vlog2.pop %v722
    %v754 = vmul.f32 %v753, 0.6931472
    %v755 = vlog2.pop %v724
    %v756 = vmul.f32 %v755, 0.6931472
    %v757 = vlog2.pop %v726
    %v758 = vmul.f32 %v757, 0.6931472
    %v759 = vlog2.pop %v728
    %v760 = vmul.f32 %v759, 0.6931472
    %v761 = vlog2.pop %v730
    %v762 = vmul.f32 %v761, 0.6931472
    %v763 = vsub.f32 %v651, %v732
    %v764 = vsub.f32 %v652, %v734
    %v765 = vsub.f32 %v653, %v736
    %v766 = vsub.f32 %v654, %v738
    %v767 = vsub.f32 %v655, %v740
    %v768 = vsub.f32 %v656, %v742
    %v769 = vsub.f32 %v657, %v744
    %v770 = vsub.f32 %v658, %v746
    %v771 = vsub.f32 %v659, %v748
    %v772 = vsub.f32 %v660, %v750
    %v773 = vsub.f32 %v661, %v752
    %v774 = vsub.f32 %v662, %v754
    %v775 = vsub.f32 %v663, %v756
    %v776 = vsub.f32 %v664, %v758
    %v777 = vsub.f32 %v665, %v760
    %v778 = vsub.f32 %v666, %v762
    %779 = vst [vmem:[#allocation9] sm:$0xff] %v763
    %780 = vst [vmem:[#allocation9 + $0x8] sm:$0xff] %v764
    %781 = vst [vmem:[#allocation9 + $0x10] sm:$0xff] %v765
    %782 = vst [vmem:[#allocation9 + $0x18] sm:$0xff] %v766
    %783 = vst [vmem:[#allocation9 + $0x20] sm:$0xff] %v767
    %784 = vst [vmem:[#allocation9 + $0x28] sm:$0xff] %v768
    %785 = vst [vmem:[#allocation9 + $0x30] sm:$0xff] %v769
    %786 = vst [vmem:[#allocation9 + $0x38] sm:$0xff] %v770
    %787 = vst [vmem:[#allocation9 + $0x40] sm:$0xff] %v771
    %788 = vst [vmem:[#allocation9 + $0x48] sm:$0xff] %v772
    %789 = vst [vmem:[#allocation9 + $0x50] sm:$0xff] %v773
    %790 = vst [vmem:[#allocation9 + $0x58] sm:$0xff] %v774
    %791 = vst [vmem:[#allocation9 + $0x60] sm:$0xff] %v775
    %792 = vst [vmem:[#allocation9 + $0x68] sm:$0xff] %v776
    %793 = vst [vmem:[#allocation9 + $0x70] sm:$0xff] %v777
    %794 = vst [vmem:[#allocation9 + $0x78] sm:$0xff] %v778
    // Predicated region
    $region34: #{tpu_custom_call.1} parent=1 // pred_check
      _
    $region35: #{tpu_custom_call.1} parent=1 // pred_check_branch
      %796 = sbr.rel (0) target = $region37
    $region36: #{tpu_custom_call.1} parent=1 // pred_region
      %s798 = ssub.s32 2048, 2048
      %799 = vsyncadd [#allocation5], %s798
      %s800 = sshll.u32 [#allocation9], 4
      %s801 = int_to_ptr.vmem [resolvable:$true] %s800
      %806 = dma.vmem_to_hbm [thread:$0]  %s801, 2048, %s5, [#allocation5], 128, 128, 8
    $region37: #{tpu_custom_call.1} parent=1 // pred_fallthru
      _
    // Predicated region
    $region38: #{tpu_custom_call.1} parent=1 // pred_check
      _
    $region39: #{tpu_custom_call.1} parent=1 // pred_check_branch
      %808 = sbr.rel (0) target = $region41
    $region40: #{tpu_custom_call.1} parent=1 // pred_region
      %809 = dma.done [#allocation5], 2048
    $region41: #{tpu_custom_call.1} parent=1 // pred_fallthru
      _
    %810 = vsyncpa [#allocation4], 1
    %811 = vsyncpa [#allocation7], 1
    %812 = vsyncpa [#allocation5], 1

</llo_original>
